<compile_context>
chip_gen: v5e
topology: v5e:2x2
jax: 0.10.0
libtpu: 0.0.40
codegen_flags: <defaults>
</compile_context>

<pallas_src>
import functools

import jax
import jax.numpy as jnp
from jax import lax
from jax.experimental import pallas as pl
from jax.experimental.pallas import tpu as pltpu


def _center_loss_kernel(x_ref,        # VMEM (block_b, D)
                        labels_ref,   # VMEM (block_b, 1) int32
                        centers_ref,  # VMEM (block_c, D)
                        out_ref,      # VMEM (1, 1) f32   (resident across grid)
                        acc_ref,      # VMEM (1, 1) f32   scratch accumulator
                        *, batch, num_classes, block_b, block_c):
    t = pl.program_id(0)   # batch tile
    c = pl.program_id(1)   # class tile
    nt = pl.num_programs(0)
    nc = pl.num_programs(1)

    @pl.when(jnp.logical_and(t == 0, c == 0))
    def _():
        acc_ref[...] = jnp.zeros_like(acc_ref)

    x = x_ref[...].astype(jnp.float32)           # (BT, D)
    cen = centers_ref[...].astype(jnp.float32)   # (BC, D)
    labs = labels_ref[...]                       # (BT, 1) int32

    # squared norms + MXU cross term (contract the feature dim directly,
    # no explicit transpose of the centers tile).
    xx = jnp.sum(x * x, axis=1, keepdims=True)   # (BT, 1)
    cc = jnp.sum(cen * cen, axis=1)              # (BC,)
    xc = lax.dot_general(x, cen,
                         dimension_numbers=(((1,), (1,)), ((), ())),
                         preferred_element_type=jnp.float32)   # (BT, BC)

    dist = xx + cc[None, :] - 2.0 * xc           # (BT, BC)

    # one-hot mask against the *global* class index of this class tile.
    col = c * block_c + lax.broadcasted_iota(jnp.int32, (block_b, block_c), 1)
    onehot = labs == col

    # reference semantics: clamp AFTER masking (masked-out entries -> 1e-12).
    val = jnp.clip(jnp.where(onehot, dist, 0.0), 1e-12, 1e12)

    # drop batch-padding rows and class-padding columns entirely.
    row = t * block_b + lax.broadcasted_iota(jnp.int32, (block_b, block_c), 0)
    valid = jnp.logical_and(row < batch, col < num_classes)
    val = jnp.where(valid, val, 0.0)

    acc_ref[...] += jnp.sum(val, keepdims=True)  # (1, 1)

    @pl.when(jnp.logical_and(t == nt - 1, c == nc - 1))
    def _():
        out_ref[...] = acc_ref[...] / jnp.float32(batch)


def center_loss(x, centers, labels, *, max_block_b=128, max_block_c=512):
    """x: (B, D) float, centers: (C, D) float, labels: (B,) int -> scalar f32."""
    B, D = x.shape
    C, Dc = centers.shape
    assert D == Dc

    # ---- batch tiling (sublane-aligned) ----
    b_aligned = pl.cdiv(B, 8) * 8
    block_b = b_aligned if b_aligned <= max_block_b else max_block_b
    b_pad = pl.cdiv(B, block_b) * block_b
    if b_pad != B:
        x = jnp.pad(x, ((0, b_pad - B), (0, 0)))
        labels = jnp.pad(labels, (0, b_pad - B))
    labels2d = labels.astype(jnp.int32).reshape(b_pad, 1)

    # ---- class tiling ----
    block_c = C if C <= max_block_c else max_block_c
    c_pad = pl.cdiv(C, block_c) * block_c
    if c_pad != C:
        centers = jnp.pad(centers, ((0, c_pad - C), (0, 0)))

    grid = (b_pad // block_b, c_pad // block_c)

    kernel = functools.partial(
        _center_loss_kernel,
        batch=B, num_classes=C, block_b=block_b, block_c=block_c,
    )

    out = pl.pallas_call(
        kernel,
        out_shape=jax.ShapeDtypeStruct((1, 1), jnp.float32),
        grid_spec=pltpu.PrefetchScalarGridSpec(
            num_scalar_prefetch=0,
            grid=grid,
            in_specs=[
                # x / labels tiles stay resident across the inner class axis.
                pl.BlockSpec((block_b, D), lambda t, c: (t, 0)),
                pl.BlockSpec((block_b, 1), lambda t, c: (t, 0)),
                # centers tiles streamed along the class axis.
                pl.BlockSpec((block_c, D), lambda t, c: (c, 0)),
            ],
            out_specs=pl.BlockSpec((1, 1), lambda t, c: (0, 0)),   # resident scalar
            scratch_shapes=[pltpu.VMEM((1, 1), jnp.float32)],
        ),
        compiler_params=pltpu.CompilerParams(
            # both grid axes feed the single resident accumulator -> sequential
            dimension_semantics=("arbitrary", "arbitrary"),
        ),
        cost_estimate=pl.CostEstimate(
            flops=2 * b_pad * c_pad * D + 4 * b_pad * D + 3 * c_pad * D
                  + 4 * b_pad * c_pad,
            transcendentals=0,
            bytes_accessed=4 * (b_pad * D
                                + (b_pad // block_b) * c_pad * D
                                + b_pad) + 4,
        ),
    )(x, labels2d, centers)
    return out[0, 0]


if __name__ == "__main__":
    # small, deterministic problem: num_classes=16, feat_dim=32, batch=8
    num_classes, feat_dim, batch = 16, 32, 8

    key = jax.random.PRNGKey(0)
    k_centers, k_x, k_lab = jax.random.split(key, 3)

    # nn.Parameter(torch.randn(num_classes, feat_dim)) -> deterministic normal init
    centers = jax.random.normal(k_centers, (num_classes, feat_dim), dtype=jnp.float32)
    x = jax.random.normal(k_x, (batch, feat_dim), dtype=jnp.float32)
    labels = jax.random.randint(k_lab, (batch,), 0, num_classes, dtype=jnp.int32)

    loss = center_loss(x, centers, labels)
    jax.block_until_ready(loss)

    # pure-JAX reference of the original (B, C) math
    xx = jnp.sum(x * x, axis=1, keepdims=True)
    cc = jnp.sum(centers * centers, axis=1, keepdims=True)
    distmat = xx + cc.T - 2.0 * (x @ centers.T)
    mask = (labels[:, None] == jnp.arange(num_classes)[None, :]).astype(jnp.float32)
    ref = jnp.sum(jnp.clip(distmat * mask, 1e-12, 1e12)) / batch
    assert jnp.allclose(loss, ref, rtol=1e-5, atol=1e-5), (loss, ref)

    print("KERNEL_OK")
</pallas_src>

<mosaic_0001>
module attributes {stable_mosaic.version = 11 : i64} {
  func.func @_center_loss_kernel(%arg0: i32, %arg1: i32, %arg2: memref<8x32xf32, #tpu.memory_space<vmem>>, %arg3: memref<8x1xi32, #tpu.memory_space<vmem>>, %arg4: memref<16x32xf32, #tpu.memory_space<vmem>>, %arg5: memref<1x1xf32, #tpu.memory_space<vmem>>, %arg6: memref<1x1xf32, #tpu.memory_space<vmem>>) attributes {dimension_semantics = [#tpu.dimension_semantics<arbitrary>, #tpu.dimension_semantics<arbitrary>], iteration_bounds = array<i64: 1, 1>, scalar_prefetch = 0 : i64, scratch_operands = 1 : i64, tpu.core_type = #tpu.core_type<tc>, window_params = [{transform_indices = @transform_0, window_bounds = array<i64: 8, 32>}, {transform_indices = @transform_1, window_bounds = array<i64: 8, 1>}, {transform_indices = @transform_2, window_bounds = array<i64: 16, 32>}, {pipeline_mode = #tpu.pipeline_mode<synchronous>, transform_indices = @transform_3, window_bounds = array<i64: 1, 1>}]} {
    %c0_i32 = arith.constant 0 : i32
    %0 = arith.cmpi eq, %arg0, %c0_i32 : i32
    %c0_i32_0 = arith.constant 0 : i32
    %1 = arith.cmpi eq, %arg1, %c0_i32_0 : i32
    %2 = arith.andi %0, %1 : i1
    %3 = arith.extui %2 : i1 to i32
    %c0_i32_1 = arith.constant 0 : i32
    %4 = arith.cmpi ne, %3, %c0_i32_1 : i32
    scf.if %4 {
      %cst_24 = arith.constant 0.000000e+00 : f32
      %57 = vector.broadcast %cst_24 : f32 to vector<1x1xf32>
      %c0_25 = arith.constant 0 : index
      %c0_26 = arith.constant 0 : index
      %58 = vector.load %arg6[%c0_25, %c0_26] : memref<1x1xf32, #tpu.memory_space<vmem>>, vector<1x1xf32>
      tpu.vector_store %arg6[%c0_25, %c0_26], %57 {strides = array<i32>} : memref<1x1xf32, #tpu.memory_space<vmem>>, vector<1x1xf32>,
    } else {
    }
    %c0 = arith.constant 0 : index
    %c0_2 = arith.constant 0 : index
    %5 = vector.load %arg2[%c0, %c0_2] : memref<8x32xf32, #tpu.memory_space<vmem>>, vector<8x32xf32>
    %c0_3 = arith.constant 0 : index
    %c0_4 = arith.constant 0 : index
    %6 = vector.load %arg4[%c0_3, %c0_4] : memref<16x32xf32, #tpu.memory_space<vmem>>, vector<16x32xf32>
    %c0_5 = arith.constant 0 : index
    %c0_6 = arith.constant 0 : index
    %7 = vector.load %arg3[%c0_5, %c0_6] : memref<8x1xi32, #tpu.memory_space<vmem>>, vector<8x1xi32>
    %8 = arith.mulf %5, %5 : vector<8x32xf32>
    %cst = arith.constant dense<0.000000e+00> : vector<8xf32>
    %9 = vector.multi_reduction <add>, %8, %cst [1] : vector<8x32xf32> to vector<8xf32>
    %10 = vector.shape_cast %9 : vector<8xf32> to vector<8x1xf32>
    %11 = arith.mulf %6, %6 : vector<16x32xf32>
    %cst_7 = arith.constant dense<0.000000e+00> : vector<16xf32>
    %12 = vector.multi_reduction <add>, %11, %cst_7 [1] : vector<16x32xf32> to vector<16xf32>
    %cst_8 = arith.constant dense<0.000000e+00> : vector<8x16xf32>
    %13 = tpu.matmul %5, %6, %cst_8 {dimension_numbers = #tpu.dot_dimension_numbers<[1], [1], [0], [0], [0, 0, 1, 0], [], []>} : vector<8x32xf32>, vector<16x32xf32>, vector<8x16xf32> -> vector<8x16xf32>
    %14 = vector.shape_cast %12 : vector<16xf32> to vector<1x16xf32>
    %15 = vector.broadcast %10 : vector<8x1xf32> to vector<8x16xf32>
    %16 = vector.broadcast %14 : vector<1x16xf32> to vector<8x16xf32>
    %17 = arith.addf %15, %16 : vector<8x16xf32>
    %cst_9 = arith.constant 2.000000e+00 : f32
    %18 = vector.broadcast %cst_9 : f32 to vector<8x16xf32>
    %19 = arith.mulf %18, %13 : vector<8x16xf32>
    %20 = arith.subf %17, %19 : vector<8x16xf32>
    %c16_i32 = arith.constant 16 : i32
    %21 = arith.muli %arg1, %c16_i32 : i32
    %22 = tpu.iota {dimensions = array<i32: 1>} : vector<8x16xi32>
    %23 = vector.broadcast %21 : i32 to vector<8x16xi32>
    %24 = arith.addi %23, %22 : vector<8x16xi32>
    %25 = vector.broadcast %7 : vector<8x1xi32> to vector<8x16xi32>
    %26 = arith.cmpi eq, %25, %24 : vector<8x16xi32>
    %cst_10 = arith.constant 0.000000e+00 : f32
    %27 = vector.broadcast %cst_10 : f32 to vector<8x16xf32>
    %28 = arith.select %26, %20, %27 : vector<8x16xi1>, vector<8x16xf32>
    %cst_11 = arith.constant 9.99999996E-13 : f32
    %cst_12 = arith.constant 9.99999995E+11 : f32
    %29 = vector.broadcast %cst_11 : f32 to vector<8x16xf32>
    %30 = arith.maximumf %29, %28 : vector<8x16xf32>
    %31 = vector.broadcast %cst_12 : f32 to vector<8x16xf32>
    %32 = arith.minimumf %31, %30 : vector<8x16xf32>
    %c8_i32 = arith.constant 8 : i32
    %33 = arith.muli %arg0, %c8_i32 : i32
    %34 = tpu.iota {dimensions = array<i32: 0>} : vector<8x16xi32>
    %35 = vector.broadcast %33 : i32 to vector<8x16xi32>
    %36 = arith.addi %35, %34 : vector<8x16xi32>
    %c8_i32_13 = arith.constant 8 : i32
    %37 = vector.broadcast %c8_i32_13 : i32 to vector<8x16xi32>
    %38 = arith.cmpi slt, %36, %37 : vector<8x16xi32>
    %c16_i32_14 = arith.constant 16 : i32
    %39 = vector.broadcast %c16_i32_14 : i32 to vector<8x16xi32>
    %40 = arith.cmpi slt, %24, %39 : vector<8x16xi32>
    %41 = arith.andi %38, %40 : vector<8x16xi1>
    %cst_15 = arith.constant 0.000000e+00 : f32
    %42 = vector.broadcast %cst_15 : f32 to vector<8x16xf32>
    %43 = arith.select %41, %32, %42 : vector<8x16xi1>, vector<8x16xf32>
    %c0_16 = arith.constant 0 : index
    %c0_17 = arith.constant 0 : index
    %44 = vector.load %arg6[%c0_16, %c0_17] : memref<1x1xf32, #tpu.memory_space<vmem>>, vector<1x1xf32>
    %45 = vector.shape_cast %43 : vector<8x16xf32> to vector<1x8x16xf32>
    %cst_18 = arith.constant dense<0.000000e+00> : vector<1xf32>
    %46 = vector.multi_reduction <add>, %45, %cst_18 [1, 2] : vector<1x8x16xf32> to vector<1xf32>
    %47 = vector.shape_cast %46 : vector<1xf32> to vector<1x1x1xf32>
    %48 = vector.extract %47[0, 0, 0] : f32 from vector<1x1x1xf32>
    %49 = vector.broadcast %48 : f32 to vector<1x1xf32>
    %50 = arith.addf %44, %49 : vector<1x1xf32>
    %c0_19 = arith.constant 0 : index
    %c0_20 = arith.constant 0 : index
    %51 = vector.load %arg6[%c0_19, %c0_20] : memref<1x1xf32, #tpu.memory_space<vmem>>, vector<1x1xf32>
    tpu.vector_store %arg6[%c0_19, %c0_20], %50 {strides = array<i32>} : memref<1x1xf32, #tpu.memory_space<vmem>>, vector<1x1xf32>,
    %c0_i32_21 = arith.constant 0 : i32
    %52 = arith.cmpi eq, %arg0, %c0_i32_21 : i32
    %c0_i32_22 = arith.constant 0 : i32
    %53 = arith.cmpi eq, %arg1, %c0_i32_22 : i32
    %54 = arith.andi %52, %53 : i1
    %55 = arith.extui %54 : i1 to i32
    %c0_i32_23 = arith.constant 0 : i32
    %56 = arith.cmpi ne, %55, %c0_i32_23 : i32
    scf.if %56 {
      %c0_24 = arith.constant 0 : index
      %c0_25 = arith.constant 0 : index
      %57 = vector.load %arg6[%c0_24, %c0_25] : memref<1x1xf32, #tpu.memory_space<vmem>>, vector<1x1xf32>
      %cst_26 = arith.constant 8.000000e+00 : f32
      %58 = vector.broadcast %cst_26 : f32 to vector<1x1xf32>
      %59 = arith.divf %57, %58 : vector<1x1xf32>
      %c0_27 = arith.constant 0 : index
      %c0_28 = arith.constant 0 : index
      %60 = vector.load %arg5[%c0_27, %c0_28] : memref<1x1xf32, #tpu.memory_space<vmem>>, vector<1x1xf32>
      tpu.vector_store %arg5[%c0_27, %c0_28], %59 {strides = array<i32>} : memref<1x1xf32, #tpu.memory_space<vmem>>, vector<1x1xf32>,
    } else {
    }
    return
  }
  func.func @transform_0(%arg0: i32, %arg1: i32) -> (i32, i32) {
    %c0_i32 = arith.constant 0 : i32
    %c0_i32_0 = arith.constant 0 : i32
    return %arg0, %c0_i32 : i32, i32
  }
  func.func @transform_1(%arg0: i32, %arg1: i32) -> (i32, i32) {
    %c0_i32 = arith.constant 0 : i32
    %c0_i32_0 = arith.constant 0 : i32
    return %arg0, %c0_i32 : i32, i32
  }
  func.func @transform_2(%arg0: i32, %arg1: i32) -> (i32, i32) {
    %c0_i32 = arith.constant 0 : i32
    %c0_i32_0 = arith.constant 0 : i32
    return %arg1, %c0_i32 : i32, i32
  }
  func.func @transform_3(%arg0: i32, %arg1: i32) -> (i32, i32) {
    %c0_i32 = arith.constant 0 : i32
    %c0_i32_0 = arith.constant 0 : i32
    %c0_i32_1 = arith.constant 0 : i32
    return %c0_i32, %c0_i32_0 : i32, i32
  }
}

</mosaic_0001>

<llo_original>
// kernel: tpu_custom_call.1
$region0: #{tpu_custom_call.1}
  #allocation0 [shape = 'u32[]', space=smem, size = 0x4, offset = 0x4, fixed_abs, tag = 'smem constant byte address 0x4 - core index']
  #allocation1 [shape = 'u32[72,128]{1,0:T(1,128)}', space=vmem, size = 0x9000, scoped, tag = 'internal scratch']
  #allocation2 [shape = 'f32[1,1]{1,0:T(1,128)}', space=vmem, size = 0x200, scoped, tag = 'scratch operand']
  %s0 = inlined_call_operand.vmem [shape: f32[8,32], index: 0, kind: input, shape index: {}]
  %s1 = inlined_call_operand.vmem [shape: s32[8,1], index: 1, kind: input, shape index: {}]
  %s2 = inlined_call_operand.hbm [shape: f32[16,32], index: 2, kind: input, shape index: {}]
  %s3 = inlined_call_operand.hbm [shape: f32[1,1], index: 3, kind: output, shape index: {}]
  %s4 = sld [smem:[#allocation0]]
  $region34: #{tpu_custom_call.1} parent=0
    _
  %s6 = ssub.s32 1, %s4
  %s7 = scalar_select 0, %s6, %s4
  $region1: #{tpu_custom_call.1} parent=0
    #allocation3 [shape = 'u8[8192]{0}', space=vmem, size = 0x2000, scoped, tag = 'input window, operand 2, single buffered']
    #allocation4 [shape = 's32[1]{0}', space=sflag, size = 0x4, scoped, tag = 'scoped memory for tpu_custom_call.1']
    #allocation5 [shape = 's32[1]{0}', space=sflag, size = 0x4, scoped, tag = 'scoped memory for tpu_custom_call.1']
    #allocation6 [shape = 'u8[512]{0}', space=vmem, size = 0x400, scoped, tag = 'output window, operand 0, single buffered']
    %8 = vsyncpa [#allocation4], 0
    %9 = vsyncpa [#allocation5], 0
    // Predicated region
    $region2: #{tpu_custom_call.1} parent=1 // pred_check
      _
    $region3: #{tpu_custom_call.1} parent=1 // pred_check_branch
      %11 = sbr.rel (0) target = $region5
    $region4: #{tpu_custom_call.1} parent=1 // pred_region
      _
    $region5: #{tpu_custom_call.1} parent=1 // pred_fallthru
      _
    // Predicated region
    $region6: #{tpu_custom_call.1} parent=1 // pred_check
      _
    $region7: #{tpu_custom_call.1} parent=1 // pred_check_branch
      %13 = sbr.rel (0) target = $region9
    $region8: #{tpu_custom_call.1} parent=1 // pred_region
      _
    $region9: #{tpu_custom_call.1} parent=1 // pred_fallthru
      _
    // Predicated region
    $region10: #{tpu_custom_call.1} parent=1 // pred_check
      _
    $region11: #{tpu_custom_call.1} parent=1 // pred_check_branch
      %15 = sbr.rel (0) target = $region13
    $region12: #{tpu_custom_call.1} parent=1 // pred_region
      %17 = vsyncadd [#allocation4], 0
      %s18 = sshll.u32 %s2, 4
      %s19 = int_to_ptr.hbm [resolvable:$true] %s18
      %s20 = sshll.u32 [#allocation3], 4
      %s21 = int_to_ptr.vmem [resolvable:$true] %s20
      %26 = dma.hbm_to_vmem [thread:$0]  %s19, 256, %s21, [#allocation4], 128, 128, 8
    $region13: #{tpu_custom_call.1} parent=1 // pred_fallthru
      _
    // Predicated region
    $region14: #{tpu_custom_call.1} parent=1 // pred_check
      _
    $region15: #{tpu_custom_call.1} parent=1 // pred_check_branch
      %28 = sbr.rel (0) target = $region17
    $region16: #{tpu_custom_call.1} parent=1 // pred_region
      %30 = dma.done [#allocation4], 256
    $region17: #{tpu_custom_call.1} parent=1 // pred_fallthru
      _
    %p31 = scmp.eq.s32.totalorder 0, 0
    %p32 = scmp.eq.s32.totalorder 0, 0
    %p33 = pnand %p31, %p32
    %p34 = pneg %p33
    // Predicated region
    $region18: #{tpu_custom_call.1} parent=1 // pred_check
      _
    $region19: #{tpu_custom_call.1} parent=1 // pred_check_branch
      %36 = sbr.rel (%p33) target = $region21
    $region20: #{tpu_custom_call.1} parent=1 // pred_region
      %vm37 = vcmask 0
      %38 = vst.msk [vmem:[#allocation2] sm:$0x1] %vm37, 0.0
    $region21: #{tpu_custom_call.1} parent=1 // pred_fallthru
      _
    %v39 = vld [vmem:[%s0] sm:$0xff]
    %v40 = vld [vmem:[#allocation3] sm:$0xff]
    %v41 = vld [vmem:[#allocation3 + $0x8] sm:$0xff]
    %v42 = vld [vmem:[%s1] sm:$0xff]
    %v43 = vmul.f32 %v39, %v39
    %vm44 = vcmask 261120
    %v45 = vsel %vm44, %v43, 0.0
    %46 = vadd.xlane.f32.xlu0 %v45
    %v47 = vpop.xlane.xlu0 %46
    %v48 = vmul.f32 %v40, %v40
    %v49 = vmul.f32 %v41, %v41
    %v50 = vsel %vm44, %v48, 0.0
    %51 = vadd.xlane.f32.xlu0 %v50
    %v52 = vpop.xlane.xlu0 %51
    %v53 = vsel %vm44, %v49, 0.0
    %54 = vadd.xlane.f32.xlu0 %v53
    %v55 = vpop.xlane.xlu0 %54
    %v57 = vsel %vm44, %v39, 0
    %v60 = vsel %vm44, %v40, 0
    %v63 = vsel %vm44, %v41, 0
    %65 = vmatpush.xpose.msra.mxu0 0.0
    %66 = vmatpush.xpose.msra.mxu0 0.0
    %67 = vmatpush.xpose.msra.mxu0 0.0
    %68 = vmatpush.xpose.msra.mxu0 0.0
    %69 = vmatpush.xpose.msra.mxu0 0.0
    %70 = vmatpush.xpose.msra.mxu0 0.0
    %71 = vmatpush.xpose.msra.mxu0 0.0
    %72 = vmatpush.xpose.msra.mxu0 0.0
    %73 = vmatpush.xpose.msra.mxu0 0.0
    %74 = vmatpush.xpose.msra.mxu0 0.0
    %75 = vmatpush.xpose.msra.mxu0 0.0
    %76 = vmatpush.xpose.msra.mxu0 0.0
    %77 = vmatpush.xpose.msra.mxu0 0.0
    %78 = vmatpush.xpose.msra.mxu0 0.0
    %79 = vmatpush.xpose.msra.mxu0 %v63
    %80 = vmatpush.xpose.msra.mxu0 %v60
    %81 = vmatmul.f32.gmra.mxu0 %v57
    %v82 = vpop.f32.mrf.mxu0
    %v83 = vadd.f32 0.0, %v82
    %84 = vdwg.mxu0
    %v87 = vlaneseq
    %v88 = vand.u32 %v87, 127
    %v89 = vperm.slane %v52, %v88
    %v90 = vadd.s32 %v88, 4294967288
    %v91 = vperm.slane %v55, %v90
    %vm92 = vcmask 130112
    %v93 = vsel %vm92, %v91, %v89
    %vm94 = vcmask 1042434
    %v95 = vsel %vm94, %v93, %v93
    %vm96 = vcmask 1043459
    %v97 = vsel %vm96, %v93, %v95
    %vm98 = vcmask 1044484
    %v99 = vsel %vm98, %v93, %v97
    %vm100 = vcmask 1045509
    %v101 = vsel %vm100, %v93, %v99
    %vm102 = vcmask 1046534
    %v103 = vsel %vm102, %v93, %v101
    %vm104 = vcmask 1047559
    %v105 = vsel %vm104, %v93, %v103
    %v107 = vadd.f32 %v47, %v105
    %v108 = vmul.f32 %v83, 2.0
    %v109 = vsub.f32 %v107, %v108
    %s110 = smul.u32 0, 16
    %v111 = vstv %s110
    %v112 = vadd.s32 %v111, %v88
    %113 = vset.pattern.permute.xlu0 0
    %114 = vperm.xlu0 %113, %v42
    %v115 = vpop.permute.xlu0 %114
    %vm116 = vcmp.eq.s32.totalorder %v115, %v112
    %v117 = vsel %vm116, %v109, 0.0
    %v118 = vmax.f32 %v117, 1e-12
    %v119 = vmin.f32 %v118, 1e+12
    %s120 = smul.u32 0, 8
    %v121 = vlaneseq
    %v122 = vshrl.u32 %v121, 7
    %v123 = vstv %s120
    %v124 = vadd.s32 %v123, %v122
    %vm125 = vcmp.lt.s32.totalorder %v124, 8
    %vm126 = vcmp.lt.s32.totalorder %v112, 16
    %vm127 = vmand %vm125, %vm126
    %v128 = vsel %vm127, %v119, 0.0
    %v129 = vld [vmem:[#allocation2] sm:$0x1]
    %vm130 = vcmask 130048
    %v131 = vsel %vm130, %v128, 0.0
    %132 = vadd.xlane.f32.xlu0 %v131
    %v133 = vpop.xlane.xlu0 %132
    %v134 = vrot.slane %v133, 4
    %v135 = vadd.f32 %v133, %v134
    %v136 = vrot.slane %v135, 2
    %v137 = vadd.f32 %v135, %v136
    %v138 = vrot.slane %v137, 1
    %v139 = vadd.f32 %v137, %v138
    %s140 = vtos %v139
    %v141 = vstv %s140
    %v142 = vadd.f32 %v129, %v141
    %vm143 = vcmask 0
    %144 = vst.msk [vmem:[#allocation2] sm:$0x1] %vm143, %v142
    // Predicated region
    $region22: #{tpu_custom_call.1} parent=1 // pred_check
      _
    $region23: #{tpu_custom_call.1} parent=1 // pred_check_branch
      %146 = sbr.rel (%p33) target = $region25
    $region24: #{tpu_custom_call.1} parent=1 // pred_region
      %v147 = vld [vmem:[#allocation2] sm:$0x1]
      %v148 = vrcp.pop 8.0
      %v149 = vmul.f32 8.0, %v148
      %v150 = vsub.f32 1.0, %v149
      %v151 = vmul.f32 %v148, %v150
      %v152 = vadd.f32 %v148, %v151
      %vm153 = vweird.f32 %v148
      %v154 = vsel %vm153, %v148, %v152
      %v155 = vmul.f32 %v147, %v154
      %156 = vst.msk [vmem:[#allocation6] sm:$0x1] %vm143, %v155
    $region25: #{tpu_custom_call.1} parent=1 // pred_fallthru
      _
    // Predicated region
    $region26: #{tpu_custom_call.1} parent=1 // pred_check
      _
    $region27: #{tpu_custom_call.1} parent=1 // pred_check_branch
      %158 = sbr.rel (0) target = $region29
    $region28: #{tpu_custom_call.1} parent=1 // pred_region
      %160 = vsyncadd [#allocation5], 0
      %s162 = sshll.u32 [#allocation6], 4
      %s163 = int_to_ptr.vmem [resolvable:$true] %s162
      %s164 = sshll.u32 %s3, 4
      %s165 = int_to_ptr.hbm [resolvable:$true] %s164
      %167 = dma.vmem_to_hbm [thread:$0]  %s163, 16, %s165, [#allocation5]
    $region29: #{tpu_custom_call.1} parent=1 // pred_fallthru
      _
    // Predicated region
    $region30: #{tpu_custom_call.1} parent=1 // pred_check
      _
    $region31: #{tpu_custom_call.1} parent=1 // pred_check_branch
      %169 = sbr.rel (0) target = $region33
    $region32: #{tpu_custom_call.1} parent=1 // pred_region
      %171 = dma.done [#allocation5], 16
    $region33: #{tpu_custom_call.1} parent=1 // pred_fallthru
      _
    %172 = vsyncpa [#allocation4], 1
    %173 = vsyncpa [#allocation5], 1

</llo_original>
